<compile_context>
chip_gen: v5e
topology: v5e:2x2
jax: 0.10.0
libtpu: 0.0.40
codegen_flags: <defaults>
</compile_context>

<pallas_src>
import functools
import math

import jax
import jax.numpy as jnp
from jax.experimental import pallas as pl
from jax.experimental.pallas import tpu as pltpu

_MIB = 1024 * 1024


def _round_up(x, m):
    return ((x + m - 1) // m) * m


# ---------------------------------------------------------------------------
# Kernels
# ---------------------------------------------------------------------------
def _silu_f32(h):
    # silu(x) = x * sigmoid(x); reciprocal routed to the EUP slot (approx rcp),
    # keeping the elementwise epilogue off the VALU critical slots.
    return h * pl.reciprocal(1.0 + jnp.exp(-h), approx=True)


def _swiglu_kernel_single(x_ref, w1_ref, w3_ref, w2_ref, o_ref):
    """n_h == 1: full hidden dim resident in VMEM — no accumulator needed.

    x_ref : [TM, F]   token tile
    w1_ref: [F, H]    gate projection (transposed nn.Linear weight)
    w3_ref: [F, H]    value projection
    w2_ref: [H, E]    down projection
    o_ref : [TM, E]
    """
    x = x_ref[...]
    h1 = jnp.dot(x, w1_ref[...], preferred_element_type=jnp.float32)
    h3 = jnp.dot(x, w3_ref[...], preferred_element_type=jnp.float32)
    gated = _silu_f32(h1) * h3
    o_ref[...] = jnp.dot(gated.astype(w2_ref.dtype), w2_ref[...],
                         preferred_element_type=jnp.float32).astype(o_ref.dtype)


def _swiglu_kernel_tiled(x_ref, w1_ref, w3_ref, w2_ref, o_ref, acc_ref):
    """Hidden dim tiled: f32 accumulator; hidden (reduction) axis is last in grid.

    x_ref  : [TM, F]      token tile (resident across the hidden axis)
    w1_ref : [F, TH]      gate-projection columns for hidden tile h
    w3_ref : [F, TH]      value-projection columns for hidden tile h
    w2_ref : [TH, E]      down-projection rows for hidden tile h
    o_ref  : [TM, E]      output tile (written on the last hidden step)
    acc_ref: [TM, E] f32  accumulator scratch
    """
    h = pl.program_id(1)

    @pl.when(h == 0)
    def _():
        acc_ref[...] = jnp.zeros_like(acc_ref)

    x = x_ref[...]
    h1 = jnp.dot(x, w1_ref[...], preferred_element_type=jnp.float32)
    h3 = jnp.dot(x, w3_ref[...], preferred_element_type=jnp.float32)
    gated = _silu_f32(h1) * h3
    acc_ref[...] += jnp.dot(gated.astype(w2_ref.dtype), w2_ref[...],
                            preferred_element_type=jnp.float32)

    @pl.when(h == pl.num_programs(1) - 1)
    def _():
        o_ref[...] = acc_ref[...].astype(o_ref.dtype)


# ---------------------------------------------------------------------------
# Tile / VMEM planning
# ---------------------------------------------------------------------------
def _physical_vmem_bytes():
    try:
        info = pltpu.get_tpu_info()
        return int(info.vmem_capacity_bytes)
    except Exception:
        # Conservative fallback (v7x per-TensorCore VMEM).
        return 64 * _MIB


def _vmem_need_bytes(tm, th, F, E, n_h, in_bytes, w_bytes):
    """Per-step VMEM footprint: double-buffered I/O tiles + intermediates + acc."""
    io = 2 * (tm * F * in_bytes          # x tile            (double-buffered)
              + 2 * F * th * w_bytes     # w1 + w3 tiles     (double-buffered)
              + th * E * w_bytes         # w2 tile           (double-buffered)
              + tm * E * in_bytes)       # out tile          (double-buffered)
    interm = tm * th * (4 + 4 + 4 + w_bytes)   # h1/h3/gated f32 + bf16 cast
    acc = tm * E * 4 if n_h > 1 else 0
    return io + interm + acc


def _pick_tiles(N, F, H, E, tile_m, tile_h, cap, in_bytes, w_bytes):
    # Token tile: large (amortizes weight streaming ~ tm flops/byte), 16-row
    # aligned for bf16 sublane packing, capped by problem size.  No forced
    # split across token tiles at small N.
    tm = min(tile_m, max(16, _round_up(N, 16)))
    # Hidden tile: largest multiple of 128 dividing H, <= tile_h, that fits VMEM.
    th_cands = [t for t in range(128, min(H, max(tile_h, 128)) + 1, 128)
                if H % t == 0]
    th_cands = sorted(th_cands, reverse=True) or [H]
    for th in th_cands:                      # shrink hidden tile first
        if _vmem_need_bytes(tm, th, F, E, H // th, in_bytes, w_bytes) <= cap:
            return tm, th
    th = th_cands[-1]
    while tm > 128 and _vmem_need_bytes(tm, th, F, E, H // th,
                                        in_bytes, w_bytes) > cap:
        tm -= 128                            # then shrink token tile
    return max(16, tm), th


# ---------------------------------------------------------------------------
# Pallas call
# ---------------------------------------------------------------------------
@functools.partial(jax.jit, static_argnums=(4, 5, 6))
def _swiglu_pallas(xf, w1_t, w3_t, w2_t, tm, th, vmem_limit):
    N, F = xf.shape
    H = w1_t.shape[1]
    E = w2_t.shape[1]
    n_m = pl.cdiv(N, tm)
    n_h = H // th

    in_bytes = jnp.dtype(xf.dtype).itemsize
    w_bytes = jnp.dtype(w1_t.dtype).itemsize
    cost = pl.CostEstimate(
        flops=2 * N * F * 2 * H + 2 * N * H * E,
        transcendentals=N * H,
        # Weights are re-streamed once per token tile.
        bytes_accessed=(n_m * (2 * F * H + H * E) * w_bytes
                        + N * F * in_bytes + N * E * in_bytes),
    )

    if n_h == 1:
        return pl.pallas_call(
            _swiglu_kernel_single,
            out_shape=jax.ShapeDtypeStruct((N, E), xf.dtype),
            grid_spec=pltpu.PrefetchScalarGridSpec(
                num_scalar_prefetch=0,
                grid=(n_m,),
                in_specs=[
                    pl.BlockSpec((tm, F), lambda i: (i, 0)),   # x tile
                    pl.BlockSpec((F, H), lambda i: (0, 0)),    # w1 (whole)
                    pl.BlockSpec((F, H), lambda i: (0, 0)),    # w3 (whole)
                    pl.BlockSpec((H, E), lambda i: (0, 0)),    # w2 (whole)
                ],
                out_specs=pl.BlockSpec((tm, E), lambda i: (i, 0)),
            ),
            compiler_params=pltpu.CompilerParams(
                dimension_semantics=("parallel",),
                vmem_limit_bytes=vmem_limit,
            ),
            cost_estimate=cost,
        )(xf, w1_t, w3_t, w2_t)

    return pl.pallas_call(
        _swiglu_kernel_tiled,
        out_shape=jax.ShapeDtypeStruct((N, E), xf.dtype),
        grid_spec=pltpu.PrefetchScalarGridSpec(
            num_scalar_prefetch=0,
            grid=(n_m, n_h),                                  # reduction axis last
            in_specs=[
                pl.BlockSpec((tm, F), lambda i, h: (i, 0)),   # x tile (reused over h)
                pl.BlockSpec((F, th), lambda i, h: (0, h)),   # w1 columns
                pl.BlockSpec((F, th), lambda i, h: (0, h)),   # w3 columns
                pl.BlockSpec((th, E), lambda i, h: (h, 0)),   # w2 rows
            ],
            out_specs=pl.BlockSpec((tm, E), lambda i, h: (i, 0)),
            scratch_shapes=[pltpu.VMEM((tm, E), jnp.float32)],
        ),
        compiler_params=pltpu.CompilerParams(
            dimension_semantics=("parallel", "arbitrary"),
            vmem_limit_bytes=vmem_limit,
        ),
        cost_estimate=cost,
    )(xf, w1_t, w3_t, w2_t)


def swiglu_mlp(x, w1_t, w3_t, w2_t, *, tile_m=512, tile_h=1024):
    """x: [B, S, F] -> [B, S, E]   (deterministic=True path; dropout = identity).

    w1_t, w3_t: [F, H]  (nn.Linear weights stored transposed; H == ffn_dim)
    w2_t      : [H, E]  (E == embedding_dim)
    """
    B, S, F = x.shape
    H = w1_t.shape[1]
    E = w2_t.shape[1]
    assert F % 128 == 0 and H % 128 == 0 and E % 128 == 0, (F, H, E)
    N = B * S
    xf = x.reshape(N, F)

    in_bytes = jnp.dtype(x.dtype).itemsize
    w_bytes = jnp.dtype(w1_t.dtype).itemsize

    # Budget against the chip's *physical* VMEM (v5e/v6e: 128 MiB, v7x: 64 MiB),
    # leaving headroom for compiler scratch.
    cap = _physical_vmem_bytes() - 4 * _MIB
    tm, th = _pick_tiles(N, F, H, E, tile_m, tile_h, cap, in_bytes, w_bytes)
    need = _vmem_need_bytes(tm, th, F, E, H // th, in_bytes, w_bytes)
    vmem_limit = int(min(cap, max(32 * _MIB, int(need * 1.25) + 2 * _MIB)))

    out = _swiglu_pallas(xf, w1_t, w3_t, w2_t, tm, th, vmem_limit)

    # TODO(synk): training-mode dropout (pltpu.prng_seed + pltpu.stateful_bernoulli)
    # not implemented; this matches the deterministic=True forward (dropout = identity).
    return out.reshape(B, S, E)


if __name__ == "__main__":
    # Small config consistent with the module: ffn_dim = 128, embedding_dim = 128,
    # batch = 2, seq = 8.
    B, S, F, E = 2, 8, 128, 128

    key = jax.random.PRNGKey(0)
    kx, k1, k2, k3 = jax.random.split(key, 4)

    # nn.Linear(in, out, bias=False).weight is [out, in]; weights are kept
    # transposed ([in, out]) so the kernel computes x @ W.  Run in bf16 with
    # f32 accumulation (MXU peak dtype on all generations).
    bnd = 1.0 / math.sqrt(F)
    x    = jax.random.normal(kx, (B, S, F), jnp.float32).astype(jnp.bfloat16)
    w1_t = jax.random.uniform(k1, (F, F), jnp.float32, -bnd, bnd).astype(jnp.bfloat16)
    w3_t = jax.random.uniform(k3, (F, F), jnp.float32, -bnd, bnd).astype(jnp.bfloat16)
    w2_t = jax.random.uniform(k2, (F, E), jnp.float32, -bnd, bnd).astype(jnp.bfloat16)

    y = swiglu_mlp(x, w1_t, w3_t, w2_t)
    y = jax.block_until_ready(y)
    assert y.shape == (B, S, E), y.shape

    # f32 reference on the same (bf16-rounded) inputs.
    xf, w1f, w3f, w2f = (a.astype(jnp.float32) for a in (x, w1_t, w3_t, w2_t))
    ref = (jax.nn.silu(xf @ w1f) * (xf @ w3f)) @ w2f

    err = float(jnp.max(jnp.abs(y.astype(jnp.float32) - ref)))
    assert jnp.allclose(y.astype(jnp.float32), ref, atol=5e-2, rtol=5e-2), err

    print("KERNEL_OK")
</pallas_src>

<mosaic_0001>
module attributes {stable_mosaic.version = 11 : i64} {
  func.func @_swiglu_kernel_single(%arg0: i32, %arg1: memref<16x128xbf16, #tpu.memory_space<vmem>>, %arg2: memref<128x128xbf16, #tpu.memory_space<vmem>>, %arg3: memref<128x128xbf16, #tpu.memory_space<vmem>>, %arg4: memref<128x128xbf16, #tpu.memory_space<vmem>>, %arg5: memref<16x128xbf16, #tpu.memory_space<vmem>>) attributes {dimension_semantics = [#tpu.dimension_semantics<parallel>], iteration_bounds = array<i64: 1>, scalar_prefetch = 0 : i64, scratch_operands = 0 : i64, tpu.core_type = #tpu.core_type<tc>, window_params = [{transform_indices = @transform_0, window_bounds = array<i64: 16, 128>}, {pipeline_mode = #tpu.pipeline_mode<synchronous>, transform_indices = @transform_1, window_bounds = array<i64: 128, 128>}, {pipeline_mode = #tpu.pipeline_mode<synchronous>, transform_indices = @transform_2, window_bounds = array<i64: 128, 128>}, {pipeline_mode = #tpu.pipeline_mode<synchronous>, transform_indices = @transform_3, window_bounds = array<i64: 128, 128>}, {transform_indices = @transform_4, window_bounds = array<i64: 16, 128>}]} {
    %c0 = arith.constant 0 : index
    %c0_0 = arith.constant 0 : index
    %0 = vector.load %arg1[%c0, %c0_0] : memref<16x128xbf16, #tpu.memory_space<vmem>>, vector<16x128xbf16>
    %c0_1 = arith.constant 0 : index
    %c0_2 = arith.constant 0 : index
    %1 = vector.load %arg2[%c0_1, %c0_2] : memref<128x128xbf16, #tpu.memory_space<vmem>>, vector<128x128xbf16>
    %cst = arith.constant dense<0.000000e+00> : vector<16x128xf32>
    %2 = tpu.matmul %0, %1, %cst {dimension_numbers = #tpu.dot_dimension_numbers<[1], [0], [0], [1], [0, 0, 1, 1], [], []>} : vector<16x128xbf16>, vector<128x128xbf16>, vector<16x128xf32> -> vector<16x128xf32>
    %c0_3 = arith.constant 0 : index
    %c0_4 = arith.constant 0 : index
    %3 = vector.load %arg3[%c0_3, %c0_4] : memref<128x128xbf16, #tpu.memory_space<vmem>>, vector<128x128xbf16>
    %cst_5 = arith.constant dense<0.000000e+00> : vector<16x128xf32>
    %4 = tpu.matmul %0, %3, %cst_5 {dimension_numbers = #tpu.dot_dimension_numbers<[1], [0], [0], [1], [0, 0, 1, 1], [], []>} : vector<16x128xbf16>, vector<128x128xbf16>, vector<16x128xf32> -> vector<16x128xf32>
    %cst_6 = arith.constant 0.000000e+00 : f32
    %5 = vector.broadcast %cst_6 : f32 to vector<16x128xf32>
    %6 = arith.subf %5, %2 : vector<16x128xf32>
    %7 = math.exp %6 : vector<16x128xf32>
    %cst_7 = arith.constant 1.000000e+00 : f32
    %8 = vector.broadcast %cst_7 : f32 to vector<16x128xf32>
    %9 = arith.addf %8, %7 : vector<16x128xf32>
    %10 = tpu.reciprocal %9 {approx = true} : vector<16x128xf32> -> vector<16x128xf32>
    %11 = arith.mulf %2, %10 : vector<16x128xf32>
    %12 = arith.mulf %11, %4 : vector<16x128xf32>
    %13 = arith.truncf %12 : vector<16x128xf32> to vector<16x128xbf16>
    %c0_8 = arith.constant 0 : index
    %c0_9 = arith.constant 0 : index
    %14 = vector.load %arg4[%c0_8, %c0_9] : memref<128x128xbf16, #tpu.memory_space<vmem>>, vector<128x128xbf16>
    %cst_10 = arith.constant dense<0.000000e+00> : vector<16x128xf32>
    %15 = tpu.matmul %13, %14, %cst_10 {dimension_numbers = #tpu.dot_dimension_numbers<[1], [0], [0], [1], [0, 0, 1, 1], [], []>} : vector<16x128xbf16>, vector<128x128xbf16>, vector<16x128xf32> -> vector<16x128xf32>
    %16 = arith.truncf %15 : vector<16x128xf32> to vector<16x128xbf16>
    %c0_11 = arith.constant 0 : index
    %c0_12 = arith.constant 0 : index
    %17 = vector.load %arg5[%c0_11, %c0_12] : memref<16x128xbf16, #tpu.memory_space<vmem>>, vector<16x128xbf16>
    tpu.vector_store %arg5[%c0_11, %c0_12], %16 {strides = array<i32>} : memref<16x128xbf16, #tpu.memory_space<vmem>>, vector<16x128xbf16>,
    return
  }
  func.func @transform_0(%arg0: i32) -> (i32, i32) {
    %c0_i32 = arith.constant 0 : i32
    %c0_i32_0 = arith.constant 0 : i32
    return %arg0, %c0_i32 : i32, i32
  }
  func.func @transform_1(%arg0: i32) -> (i32, i32) {
    %c0_i32 = arith.constant 0 : i32
    %c0_i32_0 = arith.constant 0 : i32
    %c0_i32_1 = arith.constant 0 : i32
    return %c0_i32, %c0_i32_0 : i32, i32
  }
  func.func @transform_2(%arg0: i32) -> (i32, i32) {
    %c0_i32 = arith.constant 0 : i32
    %c0_i32_0 = arith.constant 0 : i32
    %c0_i32_1 = arith.constant 0 : i32
    return %c0_i32, %c0_i32_0 : i32, i32
  }
  func.func @transform_3(%arg0: i32) -> (i32, i32) {
    %c0_i32 = arith.constant 0 : i32
    %c0_i32_0 = arith.constant 0 : i32
    %c0_i32_1 = arith.constant 0 : i32
    return %c0_i32, %c0_i32_0 : i32, i32
  }
  func.func @transform_4(%arg0: i32) -> (i32, i32) {
    %c0_i32 = arith.constant 0 : i32
    %c0_i32_0 = arith.constant 0 : i32
    return %arg0, %c0_i32 : i32, i32
  }
}

</mosaic_0001>

<llo_original>
// kernel: _swiglu_pallas.1
$region0: #{_swiglu_pallas.1}
  #allocation0 [shape = 'u32[]', space=smem, size = 0x4, offset = 0x4, fixed_abs, tag = 'smem constant byte address 0x4 - core index']
  #allocation1 [shape = 'u32[72,128]{1,0:T(1,128)}', space=vmem, size = 0x9000, scoped, tag = 'internal scratch']
  %s0 = inlined_call_operand.hbm [shape: bf16[16,128], index: 0, kind: input, shape index: {}]
  %s1 = inlined_call_operand.hbm [shape: bf16[128,128], index: 1, kind: input, shape index: {}]
  %s2 = inlined_call_operand.hbm [shape: bf16[128,128], index: 2, kind: input, shape index: {}]
  %s3 = inlined_call_operand.hbm [shape: bf16[128,128], index: 3, kind: input, shape index: {}]
  %s4 = inlined_call_operand.hbm [shape: bf16[16,128], index: 4, kind: output, shape index: {}]
  %s5 = sld [smem:[#allocation0]]
  $region42: #{_swiglu_pallas.1} parent=0
    _
  %s7 = ssub.s32 1, %s5
  %s8 = scalar_select 0, %s7, %s5
  $region1: #{_swiglu_pallas.1} parent=0
    #allocation2 [shape = 'u8[4096]{0}', space=vmem, size = 0x1000, scoped, tag = 'input window, operand 0, single buffered']
    #allocation3 [shape = 's32[1]{0}', space=sflag, size = 0x4, scoped, tag = 'scoped memory for _swiglu_pallas.1']
    #allocation4 [shape = 's32[1]{0}', space=sflag, size = 0x4, scoped, tag = 'scoped memory for _swiglu_pallas.1']
    #allocation5 [shape = 'u8[32768]{0}', space=vmem, size = 0x8000, scoped, tag = 'input window, operand 1, single buffered']
    #allocation6 [shape = 's32[1]{0}', space=sflag, size = 0x4, scoped, tag = 'scoped memory for _swiglu_pallas.1']
    #allocation7 [shape = 'u8[32768]{0}', space=vmem, size = 0x8000, scoped, tag = 'input window, operand 2, single buffered']
    #allocation8 [shape = 'u8[32768]{0}', space=vmem, size = 0x8000, scoped, tag = 'input window, operand 3, single buffered']
    #allocation9 [shape = 's32[1]{0}', space=sflag, size = 0x4, scoped, tag = 'scoped memory for _swiglu_pallas.1']
    #allocation10 [shape = 'u8[4096]{0}', space=vmem, size = 0x1000, scoped, tag = 'output window, operand 0, single buffered']
    %9 = vsyncpa [#allocation3], 0
    %10 = vsyncpa [#allocation6], 0
    %11 = vsyncpa [#allocation9], 0
    %12 = vsyncpa [#allocation4], 0
    // Predicated region
    $region2: #{_swiglu_pallas.1} parent=1 // pred_check
      _
    $region3: #{_swiglu_pallas.1} parent=1 // pred_check_branch
      %14 = sbr.rel (0) target = $region5
    $region4: #{_swiglu_pallas.1} parent=1 // pred_region
      %16 = vsyncadd [#allocation3], 0
      %s17 = sshll.u32 %s0, 4
      %s18 = int_to_ptr.hbm [resolvable:$true] %s17
      %s19 = sshll.u32 [#allocation2], 4
      %s20 = int_to_ptr.vmem [resolvable:$true] %s19
      %25 = dma.hbm_to_vmem [thread:$0]  %s18, 128, %s20, [#allocation3], 64, 64, 4
    $region5: #{_swiglu_pallas.1} parent=1 // pred_fallthru
      _
    // Predicated region
    $region6: #{_swiglu_pallas.1} parent=1 // pred_check
      _
    $region7: #{_swiglu_pallas.1} parent=1 // pred_check_branch
      %27 = sbr.rel (0) target = $region9
    $region8: #{_swiglu_pallas.1} parent=1 // pred_region
      %29 = vsyncadd [#allocation6], 0
      %s30 = sshll.u32 %s1, 4
      %s31 = int_to_ptr.hbm [resolvable:$true] %s30
      %s32 = sshll.u32 [#allocation5], 4
      %s33 = int_to_ptr.vmem [resolvable:$true] %s32
      %38 = dma.hbm_to_vmem [thread:$0]  %s31, 1024, %s33, [#allocation6], 64, 64, 4
    $region9: #{_swiglu_pallas.1} parent=1 // pred_fallthru
      _
    // Predicated region
    $region10: #{_swiglu_pallas.1} parent=1 // pred_check
      _
    $region11: #{_swiglu_pallas.1} parent=1 // pred_check_branch
      %40 = sbr.rel (0) target = $region13
    $region12: #{_swiglu_pallas.1} parent=1 // pred_region
      %42 = vsyncadd [#allocation6], 0
      %s43 = sshll.u32 %s2, 4
      %s44 = int_to_ptr.hbm [resolvable:$true] %s43
      %s45 = sshll.u32 [#allocation7], 4
      %s46 = int_to_ptr.vmem [resolvable:$true] %s45
      %51 = dma.hbm_to_vmem [thread:$0]  %s44, 1024, %s46, [#allocation6], 64, 64, 4
    $region13: #{_swiglu_pallas.1} parent=1 // pred_fallthru
      _
    // Predicated region
    $region14: #{_swiglu_pallas.1} parent=1 // pred_check
      _
    $region15: #{_swiglu_pallas.1} parent=1 // pred_check_branch
      %53 = sbr.rel (0) target = $region17
    $region16: #{_swiglu_pallas.1} parent=1 // pred_region
      %55 = vsyncadd [#allocation9], 0
      %s56 = sshll.u32 %s3, 4
      %s57 = int_to_ptr.hbm [resolvable:$true] %s56
      %s58 = sshll.u32 [#allocation8], 4
      %s59 = int_to_ptr.vmem [resolvable:$true] %s58
      %64 = dma.hbm_to_vmem [thread:$0]  %s57, 1024, %s59, [#allocation9], 64, 64, 4
    $region17: #{_swiglu_pallas.1} parent=1 // pred_fallthru
      _
    // Predicated region
    $region18: #{_swiglu_pallas.1} parent=1 // pred_check
      _
    $region19: #{_swiglu_pallas.1} parent=1 // pred_check_branch
      %66 = sbr.rel (0) target = $region21
    $region20: #{_swiglu_pallas.1} parent=1 // pred_region
      %68 = dma.done [#allocation3], 128
    $region21: #{_swiglu_pallas.1} parent=1 // pred_fallthru
      _
    // Predicated region
    $region22: #{_swiglu_pallas.1} parent=1 // pred_check
      _
    $region23: #{_swiglu_pallas.1} parent=1 // pred_check_branch
      %70 = sbr.rel (0) target = $region25
    $region24: #{_swiglu_pallas.1} parent=1 // pred_region
      %72 = dma.done [#allocation6], 1024
    $region25: #{_swiglu_pallas.1} parent=1 // pred_fallthru
      _
    // Predicated region
    $region26: #{_swiglu_pallas.1} parent=1 // pred_check
      _
    $region27: #{_swiglu_pallas.1} parent=1 // pred_check_branch
      %74 = sbr.rel (0) target = $region29
    $region28: #{_swiglu_pallas.1} parent=1 // pred_region
      %76 = dma.done [#allocation6], 1024
    $region29: #{_swiglu_pallas.1} parent=1 // pred_fallthru
      _
    // Predicated region
    $region30: #{_swiglu_pallas.1} parent=1 // pred_check
      _
    $region31: #{_swiglu_pallas.1} parent=1 // pred_check_branch
      %78 = sbr.rel (0) target = $region33
    $region32: #{_swiglu_pallas.1} parent=1 // pred_region
      %80 = dma.done [#allocation9], 1024
    $region33: #{_swiglu_pallas.1} parent=1 // pred_fallthru
      _
    %v81 = vld [vmem:[#allocation2] sm:$0xf]
    %v82 = vld [vmem:[#allocation2 + $0x4] sm:$0xf]
    %v83 = vld [vmem:[#allocation5] sm:$0xf]
    %v84 = vld [vmem:[#allocation5 + $0x4] sm:$0xf]
    %v85 = vld [vmem:[#allocation5 + $0x8] sm:$0xf]
    %v86 = vld [vmem:[#allocation5 + $0xc] sm:$0xf]
    %v87 = vld [vmem:[#allocation5 + $0x10] sm:$0xf]
    %v88 = vld [vmem:[#allocation5 + $0x14] sm:$0xf]
    %v89 = vld [vmem:[#allocation5 + $0x18] sm:$0xf]
    %v90 = vld [vmem:[#allocation5 + $0x1c] sm:$0xf]
    %v91 = vld [vmem:[#allocation5 + $0x20] sm:$0xf]
    %v92 = vld [vmem:[#allocation5 + $0x24] sm:$0xf]
    %v93 = vld [vmem:[#allocation5 + $0x28] sm:$0xf]
    %v94 = vld [vmem:[#allocation5 + $0x2c] sm:$0xf]
    %v95 = vld [vmem:[#allocation5 + $0x30] sm:$0xf]
    %v96 = vld [vmem:[#allocation5 + $0x34] sm:$0xf]
    %v97 = vld [vmem:[#allocation5 + $0x38] sm:$0xf]
    %v98 = vld [vmem:[#allocation5 + $0x3c] sm:$0xf]
    %v101 = vunpack.c.l.b16 %v81
    %v102 = vunpack.c.l.b16 %v82
    %v103 = vpack.c.b16 %v102, %v101
    %v121 = vunpack.c.l.b16 %v83
    %v122 = vunpack.c.l.b16 %v84
    %v123 = vunpack.c.l.b16 %v85
    %v124 = vunpack.c.l.b16 %v86
    %v125 = vunpack.c.l.b16 %v87
    %v126 = vunpack.c.l.b16 %v88
    %v127 = vunpack.c.l.b16 %v89
    %v128 = vunpack.c.l.b16 %v90
    %v129 = vunpack.c.l.b16 %v91
    %v130 = vunpack.c.l.b16 %v92
    %v131 = vunpack.c.l.b16 %v93
    %v132 = vunpack.c.l.b16 %v94
    %v133 = vunpack.c.l.b16 %v95
    %v134 = vunpack.c.l.b16 %v96
    %v135 = vunpack.c.l.b16 %v97
    %v136 = vunpack.c.l.b16 %v98
    %v137 = vpack.c.b16 %v122, %v121
    %v138 = vpack.c.b16 %v124, %v123
    %v139 = vpack.c.b16 %v126, %v125
    %v140 = vpack.c.b16 %v128, %v127
    %v141 = vpack.c.b16 %v130, %v129
    %v142 = vpack.c.b16 %v132, %v131
    %v143 = vpack.c.b16 %v134, %v133
    %v144 = vpack.c.b16 %v136, %v135
    %153 = vmatpush.bf16.msra.mxu0 %v144
    %154 = vmatpush.bf16.msra.mxu0 %v143
    %155 = vmatpush.bf16.msra.mxu0 %v142
    %156 = vmatpush.bf16.msra.mxu0 %v141
    %157 = vmatpush.bf16.msra.mxu0 %v140
    %158 = vmatpush.bf16.msra.mxu0 %v139
    %159 = vmatpush.bf16.msra.mxu0 %v138
    %160 = vmatpush.bf16.msra.mxu0 %v137
    %161 = vmatmul.bf16.gmra.mxu0 %v103
    %v162 = vpop.f32.mrf.mxu0
    %v163 = vadd.f32 0.0, %v162
    %v164 = vpop.f32.mrf.mxu0
    %v165 = vadd.f32 0.0, %v164
    %166 = vdwg.mxu0
    %v167 = vld [vmem:[#allocation7] sm:$0xf]
    %v168 = vld [vmem:[#allocation7 + $0x4] sm:$0xf]
    %v169 = vld [vmem:[#allocation7 + $0x8] sm:$0xf]
    %v170 = vld [vmem:[#allocation7 + $0xc] sm:$0xf]
    %v171 = vld [vmem:[#allocation7 + $0x10] sm:$0xf]
    %v172 = vld [vmem:[#allocation7 + $0x14] sm:$0xf]
    %v173 = vld [vmem:[#allocation7 + $0x18] sm:$0xf]
    %v174 = vld [vmem:[#allocation7 + $0x1c] sm:$0xf]
    %v175 = vld [vmem:[#allocation7 + $0x20] sm:$0xf]
    %v176 = vld [vmem:[#allocation7 + $0x24] sm:$0xf]
    %v177 = vld [vmem:[#allocation7 + $0x28] sm:$0xf]
    %v178 = vld [vmem:[#allocation7 + $0x2c] sm:$0xf]
    %v179 = vld [vmem:[#allocation7 + $0x30] sm:$0xf]
    %v180 = vld [vmem:[#allocation7 + $0x34] sm:$0xf]
    %v181 = vld [vmem:[#allocation7 + $0x38] sm:$0xf]
    %v182 = vld [vmem:[#allocation7 + $0x3c] sm:$0xf]
    %v199 = vunpack.c.l.b16 %v167
    %v200 = vunpack.c.l.b16 %v168
    %v201 = vunpack.c.l.b16 %v169
    %v202 = vunpack.c.l.b16 %v170
    %v203 = vunpack.c.l.b16 %v171
    %v204 = vunpack.c.l.b16 %v172
    %v205 = vunpack.c.l.b16 %v173
    %v206 = vunpack.c.l.b16 %v174
    %v207 = vunpack.c.l.b16 %v175
    %v208 = vunpack.c.l.b16 %v176
    %v209 = vunpack.c.l.b16 %v177
    %v210 = vunpack.c.l.b16 %v178
    %v211 = vunpack.c.l.b16 %v179
    %v212 = vunpack.c.l.b16 %v180
    %v213 = vunpack.c.l.b16 %v181
    %v214 = vunpack.c.l.b16 %v182
    %v215 = vpack.c.b16 %v200, %v199
    %v216 = vpack.c.b16 %v202, %v201
    %v217 = vpack.c.b16 %v204, %v203
    %v218 = vpack.c.b16 %v206, %v205
    %v219 = vpack.c.b16 %v208, %v207
    %v220 = vpack.c.b16 %v210, %v209
    %v221 = vpack.c.b16 %v212, %v211
    %v222 = vpack.c.b16 %v214, %v213
    %231 = vmatpush.bf16.msra.mxu0 %v222
    %232 = vmatpush.bf16.msra.mxu0 %v221
    %233 = vmatpush.bf16.msra.mxu0 %v220
    %234 = vmatpush.bf16.msra.mxu0 %v219
    %235 = vmatpush.bf16.msra.mxu0 %v218
    %236 = vmatpush.bf16.msra.mxu0 %v217
    %237 = vmatpush.bf16.msra.mxu0 %v216
    %238 = vmatpush.bf16.msra.mxu0 %v215
    %239 = vmatmul.bf16.gmra.mxu0 %v103
    %v240 = vpop.f32.mrf.mxu0
    %v241 = vadd.f32 0.0, %v240
    %v242 = vpop.f32.mrf.mxu0
    %v243 = vadd.f32 0.0, %v242
    %244 = vdwg.mxu0
    %v245 = vsub.f32 0.0, %v163
    %v246 = vsub.f32 0.0, %v165
    %v247 = vmul.f32 %v245, 1.442695
    %v248 = vpow.pop %v247
    %v249 = vmul.f32 %v246, 1.442695
    %v250 = vpow.pop %v249
    %v251 = vadd.f32 %v248, 1.0
    %v252 = vadd.f32 %v250, 1.0
    %v253 = vrcp.pop %v251
    %v254 = vrcp.pop %v252
    %v255 = vmul.f32 %v163, %v253
    %v256 = vmul.f32 %v165, %v254
    %v257 = vmul.f32 %v255, %v241
    %v258 = vmul.f32 %v256, %v243
    %v259 = vpack.c.bf16 %v258, %v257
    %v260 = vld [vmem:[#allocation8] sm:$0xf]
    %v261 = vld [vmem:[#allocation8 + $0x4] sm:$0xf]
    %v262 = vld [vmem:[#allocation8 + $0x8] sm:$0xf]
    %v263 = vld [vmem:[#allocation8 + $0xc] sm:$0xf]
    %v264 = vld [vmem:[#allocation8 + $0x10] sm:$0xf]
    %v265 = vld [vmem:[#allocation8 + $0x14] sm:$0xf]
    %v266 = vld [vmem:[#allocation8 + $0x18] sm:$0xf]
    %v267 = vld [vmem:[#allocation8 + $0x1c] sm:$0xf]
    %v268 = vld [vmem:[#allocation8 + $0x20] sm:$0xf]
    %v269 = vld [vmem:[#allocation8 + $0x24] sm:$0xf]
    %v270 = vld [vmem:[#allocation8 + $0x28] sm:$0xf]
    %v271 = vld [vmem:[#allocation8 + $0x2c] sm:$0xf]
    %v272 = vld [vmem:[#allocation8 + $0x30] sm:$0xf]
    %v273 = vld [vmem:[#allocation8 + $0x34] sm:$0xf]
    %v274 = vld [vmem:[#allocation8 + $0x38] sm:$0xf]
    %v275 = vld [vmem:[#allocation8 + $0x3c] sm:$0xf]
    %v292 = vunpack.c.l.b16 %v260
    %v293 = vunpack.c.l.b16 %v261
    %v294 = vunpack.c.l.b16 %v262
    %v295 = vunpack.c.l.b16 %v263
    %v296 = vunpack.c.l.b16 %v264
    %v297 = vunpack.c.l.b16 %v265
    %v298 = vunpack.c.l.b16 %v266
    %v299 = vunpack.c.l.b16 %v267
    %v300 = vunpack.c.l.b16 %v268
    %v301 = vunpack.c.l.b16 %v269
    %v302 = vunpack.c.l.b16 %v270
    %v303 = vunpack.c.l.b16 %v271
    %v304 = vunpack.c.l.b16 %v272
    %v305 = vunpack.c.l.b16 %v273
    %v306 = vunpack.c.l.b16 %v274
    %v307 = vunpack.c.l.b16 %v275
    %v308 = vpack.c.b16 %v293, %v292
    %v309 = vpack.c.b16 %v295, %v294
    %v310 = vpack.c.b16 %v297, %v296
    %v311 = vpack.c.b16 %v299, %v298
    %v312 = vpack.c.b16 %v301, %v300
    %v313 = vpack.c.b16 %v303, %v302
    %v314 = vpack.c.b16 %v305, %v304
    %v315 = vpack.c.b16 %v307, %v306
    %324 = vmatpush.bf16.msra.mxu0 %v315
    %325 = vmatpush.bf16.msra.mxu0 %v314
    %326 = vmatpush.bf16.msra.mxu0 %v313
    %327 = vmatpush.bf16.msra.mxu0 %v312
    %328 = vmatpush.bf16.msra.mxu0 %v311
    %329 = vmatpush.bf16.msra.mxu0 %v310
    %330 = vmatpush.bf16.msra.mxu0 %v309
    %331 = vmatpush.bf16.msra.mxu0 %v308
    %332 = vmatmul.bf16.gmra.mxu0 %v259
    %v333 = vpop.f32.mrf.mxu0
    %v334 = vadd.f32 0.0, %v333
    %v335 = vpop.f32.mrf.mxu0
    %v336 = vadd.f32 0.0, %v335
    %337 = vdwg.mxu0
    %v338 = vpack.c.bf16 %v334, %v334
    %v339 = vpack.c.bf16 %v336, %v336
    %340 = vst [vmem:[#allocation10] sm:$0xf] %v338
    %341 = vst [vmem:[#allocation10 + $0x4] sm:$0xf] %v339
    // Predicated region
    $region34: #{_swiglu_pallas.1} parent=1 // pred_check
      _
    $region35: #{_swiglu_pallas.1} parent=1 // pred_check_branch
      %343 = sbr.rel (0) target = $region37
    $region36: #{_swiglu_pallas.1} parent=1 // pred_region
      %345 = vsyncadd [#allocation4], 0
      %s346 = sshll.u32 [#allocation10], 4
      %s347 = int_to_ptr.vmem [resolvable:$true] %s346
      %s348 = sshll.u32 %s4, 4
      %s349 = int_to_ptr.hbm [resolvable:$true] %s348
      %354 = dma.vmem_to_hbm [thread:$0]  %s347, 128, %s349, [#allocation4], 64, 64, 4
    $region37: #{_swiglu_pallas.1} parent=1 // pred_fallthru
      _
    // Predicated region
    $region38: #{_swiglu_pallas.1} parent=1 // pred_check
      _
    $region39: #{_swiglu_pallas.1} parent=1 // pred_check_branch
      %356 = sbr.rel (0) target = $region41
    $region40: #{_swiglu_pallas.1} parent=1 // pred_region
      %358 = dma.done [#allocation4], 128
    $region41: #{_swiglu_pallas.1} parent=1 // pred_fallthru
      _
    %359 = vsyncpa [#allocation3], 1
    %360 = vsyncpa [#allocation6], 1
    %361 = vsyncpa [#allocation9], 1
    %362 = vsyncpa [#allocation4], 1

</llo_original>
